<compile_context>
chip_gen: v5e
topology: v5e:2x2
jax: 0.10.0
libtpu: 0.0.40
codegen_flags: <defaults>
</compile_context>

<pallas_src>
import jax
import jax.numpy as jnp
from jax.experimental import pallas as pl
from jax.experimental.pallas import tpu as pltpu


_FOLD = 8      # rows folded per kernel row: 8*t_dim=128, 8*feat=256 lanes
_ALIGN = 16    # sublane alignment for the folded batch tile (bf16-safe)


def _round_up(v, m):
    return ((v + m - 1) // m) * m


def _fair_ac_kernel(x_ref,
                    we0_ref, be0_ref, we1_ref, be1_ref,
                    wd0_ref, bd0_ref, wd1_ref, bd1_ref,
                    h_ref, hhat_ref):
    """Fused encoder + decoder MLP for one (row-folded) batch tile.

    encoder: x -> Linear -> ReLU -> Linear -> h
    decoder: h -> Linear -> ReLU -> Linear -> h_hat
    Matmuls accumulate in f32 on the MXU; bias add / ReLU stay in f32.
    """
    cdt = we0_ref.dtype                     # streaming / MXU-input dtype
    x = x_ref[...]

    # encoder
    z0 = jnp.dot(x, we0_ref[...], preferred_element_type=jnp.float32) + be0_ref[...]
    z0 = jnp.maximum(z0, 0.0).astype(cdt)
    h = jnp.dot(z0, we1_ref[...], preferred_element_type=jnp.float32) + be1_ref[...]
    h_ref[...] = h.astype(h_ref.dtype)

    # decoder (consumes the rounded h, matching a sequential module)
    h_c = h.astype(cdt)
    z1 = jnp.dot(h_c, wd0_ref[...], preferred_element_type=jnp.float32) + bd0_ref[...]
    z1 = jnp.maximum(z1, 0.0).astype(cdt)
    h_hat = jnp.dot(z1, wd1_ref[...], preferred_element_type=jnp.float32) + bd1_ref[...]
    hhat_ref[...] = h_hat.astype(hhat_ref.dtype)


def fair_ac_forward(x, params, *, batch_tile=2048):
    """FairACAutoEncoder forward.  Returns (h, h_hat) with dtype = x.dtype.

    params = (we0, be0, we1, be1, wd0, bd0, wd1, bd1); weights stored as
    (in_dim, out_dim) (transpose of nn.Linear.weight), biases as (1, out_dim).
    Pass bf16 x for bf16 streaming (accumulation stays in f32).
    """
    we0, be0, we1, be1, wd0, bd0, wd1, bd1 = params
    n, feat = x.shape
    hidden = we0.shape[1]
    t_dim = we1.shape[1]
    cdt = x.dtype
    fold = _FOLD

    # ---- batch tiling over folded rows (wrapper-side padding, no asserts) ----
    folded_n = pl.cdiv(n, fold)
    tb_f = min(max(batch_tile // fold, _ALIGN), _round_up(folded_n, _ALIGN))
    tb_f = _round_up(tb_f, _ALIGN)
    if tb_f >= folded_n >= 2 * _ALIGN:
        # keep >= 2 grid steps so the 'parallel' axis can shard across v7x's 2 TCs
        tb_f = _round_up(pl.cdiv(folded_n, 2), _ALIGN)
    pf_n = _round_up(folded_n, tb_f)        # folded rows after padding
    pn = pf_n * fold                        # original rows after padding
    grid = (pf_n // tb_f,)

    # ---- fold inputs / params (pure layout + tiny kron, done in the wrapper) ----
    if pn != n:
        x = jnp.pad(x, ((0, pn - n), (0, 0)))
    x_f = x.reshape(pf_n, fold * feat).astype(cdt)

    eye = jnp.eye(fold, dtype=jnp.float32)

    def w_f(w):                    # (in, out) -> block-diag (fold*in, fold*out)
        return jnp.kron(eye, w.astype(jnp.float32)).astype(cdt)

    def b_f(b):                    # (1, out) -> (1, fold*out), kept in f32
        return jnp.tile(b.astype(jnp.float32).reshape(1, -1), (1, fold))

    args = (x_f,
            w_f(we0), b_f(be0), w_f(we1), b_f(be1),
            w_f(wd0), b_f(bd0), w_f(wd1), b_f(bd1))

    # ---- block specs ----
    def full(shape):               # grid-invariant block: fetched once, resident
        return pl.BlockSpec(shape, lambda i: (0, 0))

    in_specs = [
        pl.BlockSpec((tb_f, fold * feat), lambda i: (i, 0)),            # x tile
        full((fold * feat, fold * hidden)), full((1, fold * hidden)),   # enc L0
        full((fold * hidden, fold * t_dim)), full((1, fold * t_dim)),   # enc L2
        full((fold * t_dim, fold * hidden)), full((1, fold * hidden)),  # dec L0
        full((fold * hidden, fold * feat)), full((1, fold * feat)),     # dec L2
    ]
    out_specs = [
        pl.BlockSpec((tb_f, fold * t_dim), lambda i: (i, 0)),   # h     (lane-dense)
        pl.BlockSpec((tb_f, fold * feat), lambda i: (i, 0)),    # h_hat (lane-dense)
    ]

    itemsize = jnp.dtype(cdt).itemsize
    macs = feat * hidden + hidden * t_dim + t_dim * hidden + hidden * feat
    cost = pl.CostEstimate(
        flops=int(2 * pn * fold * macs),                 # block-diag runs fold x
        transcendentals=0,
        bytes_accessed=int(pn * (feat + t_dim + feat) * itemsize
                           + fold * fold * macs * itemsize
                           + fold * (2 * hidden + t_dim + feat) * 4),
    )

    h_f, hhat_f = pl.pallas_call(
        _fair_ac_kernel,
        out_shape=(
            jax.ShapeDtypeStruct((pf_n, fold * t_dim), cdt),
            jax.ShapeDtypeStruct((pf_n, fold * feat), cdt),
        ),
        grid_spec=pltpu.PrefetchScalarGridSpec(
            num_scalar_prefetch=0,
            grid=grid,
            in_specs=in_specs,
            out_specs=out_specs,
        ),
        compiler_params=pltpu.CompilerParams(
            dimension_semantics=("parallel",),
            vmem_limit_bytes=48 * 1024 * 1024,
        ),
        cost_estimate=cost,
    )(*args)

    # un-fold (pure layout) and drop the pad rows
    h = h_f.reshape(pn, t_dim)[:n]
    h_hat = hhat_f.reshape(pn, feat)[:n]
    return h, h_hat


def init_params(key, feature_dim, transformed_feature_dim):
    """Parameter init matching FairACAutoEncoder.__init__.

    Weights: xavier_normal_ with gain=1.414; biases: PyTorch Linear default
    uniform(-1/sqrt(fan_in), 1/sqrt(fan_in)).  Weights stored as (in, out).
    """
    hidden = 2 * transformed_feature_dim
    gain = 1.414

    def xavier(k, fan_in, fan_out):
        std = gain * (2.0 / (fan_in + fan_out)) ** 0.5
        return std * jax.random.normal(k, (fan_in, fan_out), dtype=jnp.float32)

    def bias(k, fan_in, fan_out):
        bound = 1.0 / (fan_in ** 0.5)
        return jax.random.uniform(k, (1, fan_out), dtype=jnp.float32,
                                  minval=-bound, maxval=bound)

    ks = jax.random.split(key, 8)
    we0 = xavier(ks[0], feature_dim, hidden)
    be0 = bias(ks[1], feature_dim, hidden)
    we1 = xavier(ks[2], hidden, transformed_feature_dim)
    be1 = bias(ks[3], hidden, transformed_feature_dim)
    wd0 = xavier(ks[4], transformed_feature_dim, hidden)
    bd0 = bias(ks[5], transformed_feature_dim, hidden)
    wd1 = xavier(ks[6], hidden, feature_dim)
    bd1 = bias(ks[7], hidden, feature_dim)
    return (we0, be0, we1, be1, wd0, bd0, wd1, bd1)


def reference_forward(x, params):
    """Pure-JAX f32 reference of the PyTorch forward."""
    we0, be0, we1, be1, wd0, bd0, wd1, bd1 = params
    x = x.astype(jnp.float32)
    z0 = jnp.maximum(x @ we0 + be0, 0.0)
    h = z0 @ we1 + be1
    z1 = jnp.maximum(h @ wd0 + bd0, 0.0)
    h_hat = z1 @ wd1 + bd1
    return h, h_hat


if __name__ == "__main__":
    feature_dim = 32
    transformed_feature_dim = 16
    batch = 250   # deliberately NOT a multiple of the fold/tile -> exercises padding

    key = jax.random.PRNGKey(0)
    k_x, k_p = jax.random.split(key)
    x = jax.random.normal(k_x, (batch, feature_dim), dtype=jnp.float32)
    params = init_params(k_p, feature_dim, transformed_feature_dim)

    fwd = jax.jit(fair_ac_forward)

    # --- f32 path: matches the reference tightly ---
    h, h_hat = fwd(x, params)
    jax.block_until_ready((h, h_hat))
    h_ref, h_hat_ref = reference_forward(x, params)
    assert h.shape == (batch, transformed_feature_dim)
    assert h_hat.shape == (batch, feature_dim)
    assert jnp.allclose(h, h_ref, atol=1e-4, rtol=1e-4)
    assert jnp.allclose(h_hat, h_hat_ref, atol=1e-4, rtol=1e-4)

    # --- bf16 streaming path (halves HBM traffic on v6e/v7x); loose tolerance ---
    x_bf16 = x.astype(jnp.bfloat16)
    hb, hhb = fwd(x_bf16, params)
    jax.block_until_ready((hb, hhb))
    assert hb.dtype == jnp.bfloat16 and hhb.dtype == jnp.bfloat16
    assert jnp.allclose(hb.astype(jnp.float32), h_ref, atol=0.3, rtol=0.1)
    assert jnp.allclose(hhb.astype(jnp.float32), h_hat_ref, atol=0.3, rtol=0.1)

    print("KERNEL_OK")
</pallas_src>

<mosaic_0001>
module attributes {stable_mosaic.version = 11 : i64} {
  func.func @_fair_ac_kernel(%arg0: i32, %arg1: memref<16x256xf32, #tpu.memory_space<vmem>>, %arg2: memref<256x256xf32, #tpu.memory_space<vmem>>, %arg3: memref<1x256xf32, #tpu.memory_space<vmem>>, %arg4: memref<256x128xf32, #tpu.memory_space<vmem>>, %arg5: memref<1x128xf32, #tpu.memory_space<vmem>>, %arg6: memref<128x256xf32, #tpu.memory_space<vmem>>, %arg7: memref<1x256xf32, #tpu.memory_space<vmem>>, %arg8: memref<256x256xf32, #tpu.memory_space<vmem>>, %arg9: memref<1x256xf32, #tpu.memory_space<vmem>>, %arg10: memref<16x128xf32, #tpu.memory_space<vmem>>, %arg11: memref<16x256xf32, #tpu.memory_space<vmem>>) attributes {dimension_semantics = [#tpu.dimension_semantics<parallel>], iteration_bounds = array<i64: 2>, scalar_prefetch = 0 : i64, scratch_operands = 0 : i64, tpu.core_type = #tpu.core_type<tc>, window_params = [{transform_indices = @transform_0, window_bounds = array<i64: 16, 256>}, {pipeline_mode = #tpu.pipeline_mode<synchronous>, transform_indices = @transform_1, window_bounds = array<i64: 256, 256>}, {pipeline_mode = #tpu.pipeline_mode<synchronous>, transform_indices = @transform_2, window_bounds = array<i64: 1, 256>}, {pipeline_mode = #tpu.pipeline_mode<synchronous>, transform_indices = @transform_3, window_bounds = array<i64: 256, 128>}, {pipeline_mode = #tpu.pipeline_mode<synchronous>, transform_indices = @transform_4, window_bounds = array<i64: 1, 128>}, {pipeline_mode = #tpu.pipeline_mode<synchronous>, transform_indices = @transform_5, window_bounds = array<i64: 128, 256>}, {pipeline_mode = #tpu.pipeline_mode<synchronous>, transform_indices = @transform_6, window_bounds = array<i64: 1, 256>}, {pipeline_mode = #tpu.pipeline_mode<synchronous>, transform_indices = @transform_7, window_bounds = array<i64: 256, 256>}, {pipeline_mode = #tpu.pipeline_mode<synchronous>, transform_indices = @transform_8, window_bounds = array<i64: 1, 256>}, {transform_indices = @transform_9, window_bounds = array<i64: 16, 128>}, {transform_indices = @transform_10, window_bounds = array<i64: 16, 256>}]} {
    %c0 = arith.constant 0 : index
    %c0_0 = arith.constant 0 : index
    %0 = vector.load %arg1[%c0, %c0_0] : memref<16x256xf32, #tpu.memory_space<vmem>>, vector<16x256xf32>
    %c0_1 = arith.constant 0 : index
    %c0_2 = arith.constant 0 : index
    %1 = vector.load %arg2[%c0_1, %c0_2] : memref<256x256xf32, #tpu.memory_space<vmem>>, vector<256x256xf32>
    %cst = arith.constant dense<0.000000e+00> : vector<16x256xf32>
    %2 = tpu.matmul %0, %1, %cst {dimension_numbers = #tpu.dot_dimension_numbers<[1], [0], [0], [1], [0, 0, 1, 1], [], []>} : vector<16x256xf32>, vector<256x256xf32>, vector<16x256xf32> -> vector<16x256xf32>
    %c0_3 = arith.constant 0 : index
    %c0_4 = arith.constant 0 : index
    %3 = vector.load %arg3[%c0_3, %c0_4] : memref<1x256xf32, #tpu.memory_space<vmem>>, vector<1x256xf32>
    %4 = vector.broadcast %3 : vector<1x256xf32> to vector<16x256xf32>
    %5 = arith.addf %2, %4 : vector<16x256xf32>
    %cst_5 = arith.constant 0.000000e+00 : f32
    %6 = vector.broadcast %cst_5 : f32 to vector<16x256xf32>
    %7 = arith.maximumf %5, %6 : vector<16x256xf32>
    %c0_6 = arith.constant 0 : index
    %c0_7 = arith.constant 0 : index
    %8 = vector.load %arg4[%c0_6, %c0_7] : memref<256x128xf32, #tpu.memory_space<vmem>>, vector<256x128xf32>
    %cst_8 = arith.constant dense<0.000000e+00> : vector<16x128xf32>
    %9 = tpu.matmul %7, %8, %cst_8 {dimension_numbers = #tpu.dot_dimension_numbers<[1], [0], [0], [1], [0, 0, 1, 1], [], []>} : vector<16x256xf32>, vector<256x128xf32>, vector<16x128xf32> -> vector<16x128xf32>
    %c0_9 = arith.constant 0 : index
    %c0_10 = arith.constant 0 : index
    %10 = vector.load %arg5[%c0_9, %c0_10] : memref<1x128xf32, #tpu.memory_space<vmem>>, vector<1x128xf32>
    %11 = vector.broadcast %10 : vector<1x128xf32> to vector<16x128xf32>
    %12 = arith.addf %9, %11 : vector<16x128xf32>
    %c0_11 = arith.constant 0 : index
    %c0_12 = arith.constant 0 : index
    %13 = vector.load %arg10[%c0_11, %c0_12] : memref<16x128xf32, #tpu.memory_space<vmem>>, vector<16x128xf32>
    tpu.vector_store %arg10[%c0_11, %c0_12], %12 {strides = array<i32>} : memref<16x128xf32, #tpu.memory_space<vmem>>, vector<16x128xf32>,
    %c0_13 = arith.constant 0 : index
    %c0_14 = arith.constant 0 : index
    %14 = vector.load %arg6[%c0_13, %c0_14] : memref<128x256xf32, #tpu.memory_space<vmem>>, vector<128x256xf32>
    %cst_15 = arith.constant dense<0.000000e+00> : vector<16x256xf32>
    %15 = tpu.matmul %12, %14, %cst_15 {dimension_numbers = #tpu.dot_dimension_numbers<[1], [0], [0], [1], [0, 0, 1, 1], [], []>} : vector<16x128xf32>, vector<128x256xf32>, vector<16x256xf32> -> vector<16x256xf32>
    %c0_16 = arith.constant 0 : index
    %c0_17 = arith.constant 0 : index
    %16 = vector.load %arg7[%c0_16, %c0_17] : memref<1x256xf32, #tpu.memory_space<vmem>>, vector<1x256xf32>
    %17 = vector.broadcast %16 : vector<1x256xf32> to vector<16x256xf32>
    %18 = arith.addf %15, %17 : vector<16x256xf32>
    %cst_18 = arith.constant 0.000000e+00 : f32
    %19 = vector.broadcast %cst_18 : f32 to vector<16x256xf32>
    %20 = arith.maximumf %18, %19 : vector<16x256xf32>
    %c0_19 = arith.constant 0 : index
    %c0_20 = arith.constant 0 : index
    %21 = vector.load %arg8[%c0_19, %c0_20] : memref<256x256xf32, #tpu.memory_space<vmem>>, vector<256x256xf32>
    %cst_21 = arith.constant dense<0.000000e+00> : vector<16x256xf32>
    %22 = tpu.matmul %20, %21, %cst_21 {dimension_numbers = #tpu.dot_dimension_numbers<[1], [0], [0], [1], [0, 0, 1, 1], [], []>} : vector<16x256xf32>, vector<256x256xf32>, vector<16x256xf32> -> vector<16x256xf32>
    %c0_22 = arith.constant 0 : index
    %c0_23 = arith.constant 0 : index
    %23 = vector.load %arg9[%c0_22, %c0_23] : memref<1x256xf32, #tpu.memory_space<vmem>>, vector<1x256xf32>
    %24 = vector.broadcast %23 : vector<1x256xf32> to vector<16x256xf32>
    %25 = arith.addf %22, %24 : vector<16x256xf32>
    %c0_24 = arith.constant 0 : index
    %c0_25 = arith.constant 0 : index
    %26 = vector.load %arg11[%c0_24, %c0_25] : memref<16x256xf32, #tpu.memory_space<vmem>>, vector<16x256xf32>
    tpu.vector_store %arg11[%c0_24, %c0_25], %25 {strides = array<i32>} : memref<16x256xf32, #tpu.memory_space<vmem>>, vector<16x256xf32>,
    return
  }
  func.func @transform_0(%arg0: i32) -> (i32, i32) {
    %c0_i32 = arith.constant 0 : i32
    %c0_i32_0 = arith.constant 0 : i32
    return %arg0, %c0_i32 : i32, i32
  }
  func.func @transform_1(%arg0: i32) -> (i32, i32) {
    %c0_i32 = arith.constant 0 : i32
    %c0_i32_0 = arith.constant 0 : i32
    %c0_i32_1 = arith.constant 0 : i32
    return %c0_i32, %c0_i32_0 : i32, i32
  }
  func.func @transform_2(%arg0: i32) -> (i32, i32) {
    %c0_i32 = arith.constant 0 : i32
    %c0_i32_0 = arith.constant 0 : i32
    %c0_i32_1 = arith.constant 0 : i32
    return %c0_i32, %c0_i32_0 : i32, i32
  }
  func.func @transform_3(%arg0: i32) -> (i32, i32) {
    %c0_i32 = arith.constant 0 : i32
    %c0_i32_0 = arith.constant 0 : i32
    %c0_i32_1 = arith.constant 0 : i32
    return %c0_i32, %c0_i32_0 : i32, i32
  }
  func.func @transform_4(%arg0: i32) -> (i32, i32) {
    %c0_i32 = arith.constant 0 : i32
    %c0_i32_0 = arith.constant 0 : i32
    %c0_i32_1 = arith.constant 0 : i32
    return %c0_i32, %c0_i32_0 : i32, i32
  }
  func.func @transform_5(%arg0: i32) -> (i32, i32) {
    %c0_i32 = arith.constant 0 : i32
    %c0_i32_0 = arith.constant 0 : i32
    %c0_i32_1 = arith.constant 0 : i32
    return %c0_i32, %c0_i32_0 : i32, i32
  }
  func.func @transform_6(%arg0: i32) -> (i32, i32) {
    %c0_i32 = arith.constant 0 : i32
    %c0_i32_0 = arith.constant 0 : i32
    %c0_i32_1 = arith.constant 0 : i32
    return %c0_i32, %c0_i32_0 : i32, i32
  }
  func.func @transform_7(%arg0: i32) -> (i32, i32) {
    %c0_i32 = arith.constant 0 : i32
    %c0_i32_0 = arith.constant 0 : i32
    %c0_i32_1 = arith.constant 0 : i32
    return %c0_i32, %c0_i32_0 : i32, i32
  }
  func.func @transform_8(%arg0: i32) -> (i32, i32) {
    %c0_i32 = arith.constant 0 : i32
    %c0_i32_0 = arith.constant 0 : i32
    %c0_i32_1 = arith.constant 0 : i32
    return %c0_i32, %c0_i32_0 : i32, i32
  }
  func.func @transform_9(%arg0: i32) -> (i32, i32) {
    %c0_i32 = arith.constant 0 : i32
    %c0_i32_0 = arith.constant 0 : i32
    return %arg0, %c0_i32 : i32, i32
  }
  func.func @transform_10(%arg0: i32) -> (i32, i32) {
    %c0_i32 = arith.constant 0 : i32
    %c0_i32_0 = arith.constant 0 : i32
    return %arg0, %c0_i32 : i32, i32
  }
}

</mosaic_0001>

<llo_original>
// kernel: fair_ac_forward.1
$region0: #{fair_ac_forward.1}
  #allocation0 [shape = 'u32[]', space=smem, size = 0x4, offset = 0x4, fixed_abs, tag = 'smem constant byte address 0x4 - core index']
  #allocation1 [shape = 'u32[72,128]{1,0:T(1,128)}', space=vmem, size = 0x9000, scoped, tag = 'internal scratch']
  %s0 = inlined_call_operand.vmem [shape: f32[32,256], index: 0, kind: input, shape index: {}]
  %s1 = inlined_call_operand.vmem [shape: f32[256,256], index: 1, kind: input, shape index: {}]
  %s2 = inlined_call_operand.vmem [shape: f32[1,256], index: 2, kind: input, shape index: {}]
  %s3 = inlined_call_operand.vmem [shape: f32[256,128], index: 3, kind: input, shape index: {}]
  %s4 = inlined_call_operand.vmem [shape: f32[1,128], index: 4, kind: input, shape index: {}]
  %s5 = inlined_call_operand.vmem [shape: f32[128,256], index: 5, kind: input, shape index: {}]
  %s6 = inlined_call_operand.vmem [shape: f32[1,256], index: 6, kind: input, shape index: {}]
  %s7 = inlined_call_operand.vmem [shape: f32[256,256], index: 7, kind: input, shape index: {}]
  %s8 = inlined_call_operand.vmem [shape: f32[1,256], index: 8, kind: input, shape index: {}]
  %s9 = inlined_call_operand.vmem [shape: f32[32,128], index: 9, kind: output, shape index: {0}]
  %s10 = inlined_call_operand.vmem [shape: f32[32,256], index: 10, kind: output, shape index: {1}]
  %11 = xla_tuple %s9, %s10
  %s12 = sld [smem:[#allocation0]]
  $region77: #{fair_ac_forward.1} parent=0
    _
  %s14 = ssub.s32 1, %s12
  %s15 = scalar_select 0, %s14, %s12
  loop: start=0, step=1, limit=4
  $region2: #{fair_ac_forward.1} parent=0 // loop_pre_header
    _
  $region3: #{fair_ac_forward.1} parent=0 // loop_header
    %s17 = sphi 0, %s21
    %p18 = scmp.ge.s32.totalorder %s17, 4
    %s27 = sphi 0, %s29
    %s30 = sphi 0, %s27
    %s31 = sphi 0, %s30
    %s47 = sphi 0, %s31
    %s51 = sphi 0, %s51
    %s53 = sphi 0, %s51
    %s54 = sphi 0, %s53
    %s68 = sphi 0, %s54
    %s72 = sphi 0, %s72
    %s74 = sphi 0, %s72
    %s75 = sphi 0, %s74
    %s89 = sphi 0, %s75
    %s93 = sphi 0, %s93
    %s95 = sphi 0, %s93
    %s96 = sphi 0, %s95
    %s110 = sphi 0, %s96
    %s114 = sphi 0, %s114
    %s116 = sphi 0, %s114
    %s117 = sphi 0, %s116
    %s131 = sphi 0, %s117
    %s135 = sphi 0, %s135
    %s137 = sphi 0, %s135
    %s138 = sphi 0, %s137
    %s152 = sphi 0, %s138
    %s156 = sphi 0, %s156
    %s158 = sphi 0, %s156
    %s159 = sphi 0, %s158
    %s173 = sphi 0, %s159
    %s177 = sphi 0, %s177
    %s179 = sphi 0, %s177
    %s180 = sphi 0, %s179
    %s194 = sphi 0, %s180
    %s198 = sphi 0, %s198
    %s200 = sphi 0, %s198
    %s201 = sphi 0, %s200
    %s215 = sphi 0, %s201
    %s221 = sphi 0, %s223
    %s224 = sphi 0, %s221
    %s225 = sphi 0, %s224
    %s241 = sphi 0, %s225
    %s247 = sphi 0, %s249
    %s250 = sphi 0, %s247
    %s251 = sphi 0, %s250
    %s267 = sphi 0, %s251
  $region4: #{fair_ac_forward.1} parent=0 // loop_header_branch
    %20 = sbr.rel (%p18) target = $region8
  $region5: #{fair_ac_forward.1} parent=0 // loop_body
    %s22 = ssub.s32 %s17, 1
    %s23 = ssub.s32 %s17, 2
    %s24 = sadd.s32 %s17, 1
    %s25 = ssub.s32 %s17, %s24
    %p26 = scmp.eq.s32.totalorder %s25, 0
    %s28 = sadd.s32 %s27, 1
    %s29 = scalar_select %p26, %s27, %s28
    %p32 = pneg %p26
    %p33 = scmp.eq.s32.totalorder %s17, 1
    %p34 = por %p32, %p33
    %p35 = scmp.ne.s32.totalorder %s27, %s30
    %p36 = scmp.eq.s32.totalorder %s17, 0
    %p37 = por %p35, %p36
    %p38 = scmp.ne.s32.totalorder %s27, %s30
    %p39 = scmp.eq.s32.totalorder %s22, 1
    %p40 = por %p38, %p39
    %p41 = scmp.ne.s32.totalorder %s30, %s31
    %p42 = scmp.eq.s32.totalorder %s22, 0
    %p43 = por %p41, %p42
    %p44 = scmp.ne.s32.totalorder %s30, %s31
    %p45 = scmp.eq.s32.totalorder %s23, 1
    %p46 = por %p44, %p45
    %p48 = scmp.ne.s32.totalorder %s31, %s47
    %p49 = scmp.eq.s32.totalorder %s23, 0
    %p50 = por %p48, %p49
    %s52 = sadd.s32 %s51, 1
    %p55 = scmp.eq.s32.totalorder %s17, 1
    %p56 = scmp.ne.s32.totalorder %s51, %s53
    %p57 = scmp.eq.s32.totalorder %s17, 0
    %p58 = por %p56, %p57
    %p59 = scmp.ne.s32.totalorder %s51, %s53
    %p60 = scmp.eq.s32.totalorder %s22, 1
    %p61 = por %p59, %p60
    %p62 = scmp.ne.s32.totalorder %s53, %s54
    %p63 = scmp.eq.s32.totalorder %s22, 0
    %p64 = por %p62, %p63
    %p65 = scmp.ne.s32.totalorder %s53, %s54
    %p66 = scmp.eq.s32.totalorder %s23, 1
    %p67 = por %p65, %p66
    %p69 = scmp.ne.s32.totalorder %s54, %s68
    %p70 = scmp.eq.s32.totalorder %s23, 0
    %p71 = por %p69, %p70
    %s73 = sadd.s32 %s72, 1
    %p76 = scmp.eq.s32.totalorder %s17, 1
    %p77 = scmp.ne.s32.totalorder %s72, %s74
    %p78 = scmp.eq.s32.totalorder %s17, 0
    %p79 = por %p77, %p78
    %p80 = scmp.ne.s32.totalorder %s72, %s74
    %p81 = scmp.eq.s32.totalorder %s22, 1
    %p82 = por %p80, %p81
    %p83 = scmp.ne.s32.totalorder %s74, %s75
    %p84 = scmp.eq.s32.totalorder %s22, 0
    %p85 = por %p83, %p84
    %p86 = scmp.ne.s32.totalorder %s74, %s75
    %p87 = scmp.eq.s32.totalorder %s23, 1
    %p88 = por %p86, %p87
    %p90 = scmp.ne.s32.totalorder %s75, %s89
    %p91 = scmp.eq.s32.totalorder %s23, 0
    %p92 = por %p90, %p91
    %s94 = sadd.s32 %s93, 1
    %p97 = scmp.eq.s32.totalorder %s17, 1
    %p98 = scmp.ne.s32.totalorder %s93, %s95
    %p99 = scmp.eq.s32.totalorder %s17, 0
    %p100 = por %p98, %p99
    %p101 = scmp.ne.s32.totalorder %s93, %s95
    %p102 = scmp.eq.s32.totalorder %s22, 1
    %p103 = por %p101, %p102
    %p104 = scmp.ne.s32.totalorder %s95, %s96
    %p105 = scmp.eq.s32.totalorder %s22, 0
    %p106 = por %p104, %p105
    %p107 = scmp.ne.s32.totalorder %s95, %s96
    %p108 = scmp.eq.s32.totalorder %s23, 1
    %p109 = por %p107, %p108
    %p111 = scmp.ne.s32.totalorder %s96, %s110
    %p112 = scmp.eq.s32.totalorder %s23, 0
    %p113 = por %p111, %p112
    %s115 = sadd.s32 %s114, 1
    %p118 = scmp.eq.s32.totalorder %s17, 1
    %p119 = scmp.ne.s32.totalorder %s114, %s116
    %p120 = scmp.eq.s32.totalorder %s17, 0
    %p121 = por %p119, %p120
    %p122 = scmp.ne.s32.totalorder %s114, %s116
    %p123 = scmp.eq.s32.totalorder %s22, 1
    %p124 = por %p122, %p123
    %p125 = scmp.ne.s32.totalorder %s116, %s117
    %p126 = scmp.eq.s32.totalorder %s22, 0
    %p127 = por %p125, %p126
    %p128 = scmp.ne.s32.totalorder %s116, %s117
    %p129 = scmp.eq.s32.totalorder %s23, 1
    %p130 = por %p128, %p129
    %p132 = scmp.ne.s32.totalorder %s117, %s131
    %p133 = scmp.eq.s32.totalorder %s23, 0
    %p134 = por %p132, %p133
    %s136 = sadd.s32 %s135, 1
    %p139 = scmp.eq.s32.totalorder %s17, 1
    %p140 = scmp.ne.s32.totalorder %s135, %s137
    %p141 = scmp.eq.s32.totalorder %s17, 0
    %p142 = por %p140, %p141
    %p143 = scmp.ne.s32.totalorder %s135, %s137
    %p144 = scmp.eq.s32.totalorder %s22, 1
    %p145 = por %p143, %p144
    %p146 = scmp.ne.s32.totalorder %s137, %s138
    %p147 = scmp.eq.s32.totalorder %s22, 0
    %p148 = por %p146, %p147
    %p149 = scmp.ne.s32.totalorder %s137, %s138
    %p150 = scmp.eq.s32.totalorder %s23, 1
    %p151 = por %p149, %p150
    %p153 = scmp.ne.s32.totalorder %s138, %s152
    %p154 = scmp.eq.s32.totalorder %s23, 0
    %p155 = por %p153, %p154
    %s157 = sadd.s32 %s156, 1
    %p160 = scmp.eq.s32.totalorder %s17, 1
    %p161 = scmp.ne.s32.totalorder %s156, %s158
    %p162 = scmp.eq.s32.totalorder %s17, 0
    %p163 = por %p161, %p162
    %p164 = scmp.ne.s32.totalorder %s156, %s158
    %p165 = scmp.eq.s32.totalorder %s22, 1
    %p166 = por %p164, %p165
    %p167 = scmp.ne.s32.totalorder %s158, %s159
    %p168 = scmp.eq.s32.totalorder %s22, 0
    %p169 = por %p167, %p168
    %p170 = scmp.ne.s32.totalorder %s158, %s159
    %p171 = scmp.eq.s32.totalorder %s23, 1
    %p172 = por %p170, %p171
    %p174 = scmp.ne.s32.totalorder %s159, %s173
    %p175 = scmp.eq.s32.totalorder %s23, 0
    %p176 = por %p174, %p175
    %s178 = sadd.s32 %s177, 1
    %p181 = scmp.eq.s32.totalorder %s17, 1
    %p182 = scmp.ne.s32.totalorder %s177, %s179
    %p183 = scmp.eq.s32.totalorder %s17, 0
    %p184 = por %p182, %p183
    %p185 = scmp.ne.s32.totalorder %s177, %s179
    %p186 = scmp.eq.s32.totalorder %s22, 1
    %p187 = por %p185, %p186
    %p188 = scmp.ne.s32.totalorder %s179, %s180
    %p189 = scmp.eq.s32.totalorder %s22, 0
    %p190 = por %p188, %p189
    %p191 = scmp.ne.s32.totalorder %s179, %s180
    %p192 = scmp.eq.s32.totalorder %s23, 1
    %p193 = por %p191, %p192
    %p195 = scmp.ne.s32.totalorder %s180, %s194
    %p196 = scmp.eq.s32.totalorder %s23, 0
    %p197 = por %p195, %p196
    %s199 = sadd.s32 %s198, 1
    %p202 = scmp.eq.s32.totalorder %s17, 1
    %p203 = scmp.ne.s32.totalorder %s198, %s200
    %p204 = scmp.eq.s32.totalorder %s17, 0
    %p205 = por %p203, %p204
    %p206 = scmp.ne.s32.totalorder %s198, %s200
    %p207 = scmp.eq.s32.totalorder %s22, 1
    %p208 = por %p206, %p207
    %p209 = scmp.ne.s32.totalorder %s200, %s201
    %p210 = scmp.eq.s32.totalorder %s22, 0
    %p211 = por %p209, %p210
    %p212 = scmp.ne.s32.totalorder %s200, %s201
    %p213 = scmp.eq.s32.totalorder %s23, 1
    %p214 = por %p212, %p213
    %p216 = scmp.ne.s32.totalorder %s201, %s215
    %p217 = scmp.eq.s32.totalorder %s23, 0
    %p218 = por %p216, %p217
    %s219 = ssub.s32 %s17, %s24
    %p220 = scmp.eq.s32.totalorder %s219, 0
    %s222 = sadd.s32 %s221, 1
    %s223 = scalar_select %p220, %s221, %s222
    %p226 = pneg %p220
    %p227 = scmp.eq.s32.totalorder %s17, 1
    %p228 = por %p226, %p227
    %p229 = scmp.ne.s32.totalorder %s221, %s224
    %p230 = scmp.eq.s32.totalorder %s17, 0
    %p231 = por %p229, %p230
    %p232 = scmp.ne.s32.totalorder %s221, %s224
    %p233 = scmp.eq.s32.totalorder %s22, 1
    %p234 = por %p232, %p233
    %p235 = scmp.ne.s32.totalorder %s224, %s225
    %p236 = scmp.eq.s32.totalorder %s22, 0
    %p237 = por %p235, %p236
    %p238 = scmp.ne.s32.totalorder %s224, %s225
    %p239 = scmp.eq.s32.totalorder %s23, 1
    %p240 = por %p238, %p239
    %p242 = scmp.ne.s32.totalorder %s225, %s241
    %p243 = scmp.eq.s32.totalorder %s23, 0
    %p244 = por %p242, %p243
    %s245 = ssub.s32 %s17, %s24
    %p246 = scmp.eq.s32.totalorder %s245, 0
    %s248 = sadd.s32 %s247, 1
    %s249 = scalar_select %p246, %s247, %s248
    %p252 = pneg %p246
    %p253 = scmp.eq.s32.totalorder %s17, 1
    %p254 = por %p252, %p253
    %p255 = scmp.ne.s32.totalorder %s247, %s250
    %p256 = scmp.eq.s32.totalorder %s17, 0
    %p257 = por %p255, %p256
    %p258 = scmp.ne.s32.totalorder %s247, %s250
    %p259 = scmp.eq.s32.totalorder %s22, 1
    %p260 = por %p258, %p259
    %p261 = scmp.ne.s32.totalorder %s250, %s251
    %p262 = scmp.eq.s32.totalorder %s22, 0
    %p263 = por %p261, %p262
    %p264 = scmp.ne.s32.totalorder %s250, %s251
    %p265 = scmp.eq.s32.totalorder %s23, 1
    %p266 = por %p264, %p265
    %p268 = scmp.ne.s32.totalorder %s251, %s267
    %p269 = scmp.eq.s32.totalorder %s23, 0
    %p270 = por %p268, %p269
    %p271 = scmp.le.s32.totalorder 1, %s17
    %p272 = scmp.lt.s32.totalorder %s17, 3
    %p273 = pnand %p271, %p272
    %p274 = pneg %p273
    // Predicated region
    $region9: #{fair_ac_forward.1} parent=5 // pred_check
      _
    $region10: #{fair_ac_forward.1} parent=5 // pred_check_branch
      %276 = sbr.rel (%p273) target = $region12
    $region11: #{fair_ac_forward.1} parent=5 // pred_region
      %s277 = ssub.s32 %s17, 1
      // Predicated region
      $region13: #{fair_ac_forward.1} parent=11 // pred_check
        %p278 = pneg %p64
      $region14: #{fair_ac_forward.1} parent=11 // pred_check_branch
        %280 = sbr.rel (%p278) target = $region16
      $region15: #{fair_ac_forward.1} parent=11 // pred_region
        _
      $region16: #{fair_ac_forward.1} parent=11 // pred_fallthru
        _
      // Predicated region
      $region17: #{fair_ac_forward.1} parent=11 // pred_check
        %p281 = pneg %p85
      $region18: #{fair_ac_forward.1} parent=11 // pred_check_branch
        %283 = sbr.rel (%p281) target = $region20
      $region19: #{fair_ac_forward.1} parent=11 // pred_region
        _
      $region20: #{fair_ac_forward.1} parent=11 // pred_fallthru
        _
      // Predicated region
      $region21: #{fair_ac_forward.1} parent=11 // pred_check
        %p284 = pneg %p106
      $region22: #{fair_ac_forward.1} parent=11 // pred_check_branch
        %286 = sbr.rel (%p284) target = $region24
      $region23: #{fair_ac_forward.1} parent=11 // pred_region
        _
      $region24: #{fair_ac_forward.1} parent=11 // pred_fallthru
        _
      // Predicated region
      $region25: #{fair_ac_forward.1} parent=11 // pred_check
        %p287 = pneg %p127
      $region26: #{fair_ac_forward.1} parent=11 // pred_check_branch
        %289 = sbr.rel (%p287) target = $region28
      $region27: #{fair_ac_forward.1} parent=11 // pred_region
        _
      $region28: #{fair_ac_forward.1} parent=11 // pred_fallthru
        _
      // Predicated region
      $region29: #{fair_ac_forward.1} parent=11 // pred_check
        %p290 = pneg %p148
      $region30: #{fair_ac_forward.1} parent=11 // pred_check_branch
        %292 = sbr.rel (%p290) target = $region32
      $region31: #{fair_ac_forward.1} parent=11 // pred_region
        _
      $region32: #{fair_ac_forward.1} parent=11 // pred_fallthru
        _
      // Predicated region
      $region33: #{fair_ac_forward.1} parent=11 // pred_check
        %p293 = pneg %p169
      $region34: #{fair_ac_forward.1} parent=11 // pred_check_branch
        %295 = sbr.rel (%p293) target = $region36
      $region35: #{fair_ac_forward.1} parent=11 // pred_region
        _
      $region36: #{fair_ac_forward.1} parent=11 // pred_fallthru
        _
      // Predicated region
      $region37: #{fair_ac_forward.1} parent=11 // pred_check
        %p296 = pneg %p190
      $region38: #{fair_ac_forward.1} parent=11 // pred_check_branch
        %298 = sbr.rel (%p296) target = $region40
      $region39: #{fair_ac_forward.1} parent=11 // pred_region
        _
      $region40: #{fair_ac_forward.1} parent=11 // pred_fallthru
        _
      // Predicated region
      $region41: #{fair_ac_forward.1} parent=11 // pred_check
        %p299 = pneg %p211
      $region42: #{fair_ac_forward.1} parent=11 // pred_check_branch
        %301 = sbr.rel (%p299) target = $region44
      $region43: #{fair_ac_forward.1} parent=11 // pred_region
        _
      $region44: #{fair_ac_forward.1} parent=11 // pred_fallthru
        _
    $region12: #{fair_ac_forward.1} parent=5 // pred_fallthru
      _
    %p302 = scmp.lt.s32.totalorder %s17, 2
    // Predicated region
    $region45: #{fair_ac_forward.1} parent=5 // pred_check
      %p303 = pneg %p302
    $region46: #{fair_ac_forward.1} parent=5 // pred_check_branch
      %305 = sbr.rel (%p303) target = $region48
    $region47: #{fair_ac_forward.1} parent=5 // pred_region
      // Predicated region
      $region49: #{fair_ac_forward.1} parent=47 // pred_check
        %p306 = pneg %p37
      $region50: #{fair_ac_forward.1} parent=47 // pred_check_branch
        %308 = sbr.rel (%p306) target = $region52
      $region51: #{fair_ac_forward.1} parent=47 // pred_region
        %s309 = smul.u32 2, %s17
        %p310 = scmp.lt.s32.totalorder %s309, 3
        %s311 = scalar_select %p310, %s309, 3
        %s312 = smul.addr %s311, 2
        %s313 = smul.addr %s312, 8
        %s314 = scalar_lea.vmem %s0, %s313
        %s315 = smul.u32 2, %s17
      $region52: #{fair_ac_forward.1} parent=47 // pred_fallthru
        _
    $region48: #{fair_ac_forward.1} parent=5 // pred_fallthru
      _
    %p316 = scmp.le.s32.totalorder 1, %s17
    %p317 = scmp.lt.s32.totalorder %s17, 3
    %p318 = pnand %p316, %p317
    %p319 = pneg %p318
    // Predicated region
    $region53: #{fair_ac_forward.1} parent=5 // pred_check
      _
    $region54: #{fair_ac_forward.1} parent=5 // pred_check_branch
      %321 = sbr.rel (%p318) target = $region56
    $region55: #{fair_ac_forward.1} parent=5 // pred_region
      %s322 = ssub.s32 %s17, 1
      %s323 = smul.u32 2, %s22
      %p324 = scmp.lt.s32.totalorder %s323, 3
      %s325 = scalar_select %p324, %s323, 3
      %s326 = smul.addr %s325, 2
      %s327 = smul.addr %s326, 8
      %s328 = scalar_lea.vmem %s0, %s327
      %p329 = pneg %p43
      %p330 = pneg %p40
      %p331 = pneg %p64
      %p332 = pneg %p61
      %p333 = pneg %p85
      %p334 = pneg %p82
      %p335 = pneg %p106
      %p336 = pneg %p103
      %p337 = pneg %p127
      %p338 = pneg %p124
      %p339 = pneg %p148
      %p340 = pneg %p145
      %p341 = pneg %p169
      %p342 = pneg %p166
      %p343 = pneg %p190
      %p344 = pneg %p187
      %p345 = pneg %p211
      %p346 = pneg %p208
      %p347 = pneg %p237
      %p348 = pneg %p234
      %s349 = smul.u32 2, %s22
      %p350 = scmp.lt.s32.totalorder %s349, 3
      %s351 = scalar_select %p350, %s349, 3
      %s352 = smul.addr %s351, 8
      %s353 = scalar_lea.vmem %s9, %s352
      %p354 = pneg %p263
      %p355 = pneg %p260
      %s356 = smul.u32 2, %s22
      %p357 = scmp.lt.s32.totalorder %s356, 3
      %s358 = scalar_select %p357, %s356, 3
      %s359 = smul.addr %s358, 2
      %s360 = smul.addr %s359, 8
      %s361 = scalar_lea.vmem %s10, %s360
      %s362 = smul.u32 2, %s22
      %p363 = scmp.lt.s32.totalorder %s362, 3
      %s364 = scalar_select %p363, %s362, 3
      %s365 = smul.addr %s364, 2
      %s366 = smul.addr %s365, 8
      %s367 = scalar_lea.vmem %s0, %s366
      %s368 = smul.u32 2, %s22
      %s369 = smul.u32 2, %s22
      %p370 = scmp.lt.s32.totalorder %s369, 3
      %s371 = scalar_select %p370, %s369, 3
      %s372 = smul.addr %s371, 8
      %s373 = scalar_lea.vmem %s9, %s372
      %s374 = smul.u32 2, %s22
      %s375 = smul.u32 2, %s22
      %p376 = scmp.lt.s32.totalorder %s375, 3
      %s377 = scalar_select %p376, %s375, 3
      %s378 = smul.addr %s377, 2
      %s379 = smul.addr %s378, 8
      %s380 = scalar_lea.vmem %s10, %s379
      %s381 = smul.u32 2, %s22
      %v382 = vld [vmem:[%s367] sm:$0xff]
      %v383 = vld [vmem:[%s367 + $0x8] sm:$0xff]
      %v384 = vld [vmem:[%s367 + $0x10] sm:$0xff]
      %v385 = vld [vmem:[%s367 + $0x18] sm:$0xff]
      %v386 = vld [vmem:[%s1] sm:$0xff]
      %v387 = vld [vmem:[%s1 + $0x8] sm:$0xff]
      %v388 = vld [vmem:[%s1 + $0x10] sm:$0xff]
      %v389 = vld [vmem:[%s1 + $0x18] sm:$0xff]
      %v390 = vld [vmem:[%s1 + $0x20] sm:$0xff]
      %v391 = vld [vmem:[%s1 + $0x28] sm:$0xff]
      %v392 = vld [vmem:[%s1 + $0x30] sm:$0xff]
      %v393 = vld [vmem:[%s1 + $0x38] sm:$0xff]
      %v394 = vld [vmem:[%s1 + $0x40] sm:$0xff]
      %v395 = vld [vmem:[%s1 + $0x48] sm:$0xff]
      %v396 = vld [vmem:[%s1 + $0x50] sm:$0xff]
      %v397 = vld [vmem:[%s1 + $0x58] sm:$0xff]
      %v398 = vld [vmem:[%s1 + $0x60] sm:$0xff]
      %v399 = vld [vmem:[%s1 + $0x68] sm:$0xff]
      %v400 = vld [vmem:[%s1 + $0x70] sm:$0xff]
      %v401 = vld [vmem:[%s1 + $0x78] sm:$0xff]
      %v402 = vld [vmem:[%s1 + $0x80] sm:$0xff]
      %v403 = vld [vmem:[%s1 + $0x88] sm:$0xff]
      %v404 = vld [vmem:[%s1 + $0x90] sm:$0xff]
      %v405 = vld [vmem:[%s1 + $0x98] sm:$0xff]
      %v406 = vld [vmem:[%s1 + $0xa0] sm:$0xff]
      %v407 = vld [vmem:[%s1 + $0xa8] sm:$0xff]
      %v408 = vld [vmem:[%s1 + $0xb0] sm:$0xff]
      %v409 = vld [vmem:[%s1 + $0xb8] sm:$0xff]
      %v410 = vld [vmem:[%s1 + $0xc0] sm:$0xff]
      %v411 = vld [vmem:[%s1 + $0xc8] sm:$0xff]
      %v412 = vld [vmem:[%s1 + $0xd0] sm:$0xff]
      %v413 = vld [vmem:[%s1 + $0xd8] sm:$0xff]
      %v414 = vld [vmem:[%s1 + $0xe0] sm:$0xff]
      %v415 = vld [vmem:[%s1 + $0xe8] sm:$0xff]
      %v416 = vld [vmem:[%s1 + $0xf0] sm:$0xff]
      %v417 = vld [vmem:[%s1 + $0xf8] sm:$0xff]
      %v418 = vld [vmem:[%s1 + $0x100] sm:$0xff]
      %v419 = vld [vmem:[%s1 + $0x108] sm:$0xff]
      %v420 = vld [vmem:[%s1 + $0x110] sm:$0xff]
      %v421 = vld [vmem:[%s1 + $0x118] sm:$0xff]
      %v422 = vld [vmem:[%s1 + $0x120] sm:$0xff]
      %v423 = vld [vmem:[%s1 + $0x128] sm:$0xff]
      %v424 = vld [vmem:[%s1 + $0x130] sm:$0xff]
      %v425 = vld [vmem:[%s1 + $0x138] sm:$0xff]
      %v426 = vld [vmem:[%s1 + $0x140] sm:$0xff]
      %v427 = vld [vmem:[%s1 + $0x148] sm:$0xff]
      %v428 = vld [vmem:[%s1 + $0x150] sm:$0xff]
      %v429 = vld [vmem:[%s1 + $0x158] sm:$0xff]
      %v430 = vld [vmem:[%s1 + $0x160] sm:$0xff]
      %v431 = vld [vmem:[%s1 + $0x168] sm:$0xff]
      %v432 = vld [vmem:[%s1 + $0x170] sm:$0xff]
      %v433 = vld [vmem:[%s1 + $0x178] sm:$0xff]
      %v434 = vld [vmem:[%s1 + $0x180] sm:$0xff]
      %v435 = vld [vmem:[%s1 + $0x188] sm:$0xff]
      %v436 = vld [vmem:[%s1 + $0x190] sm:$0xff]
      %v437 = vld [vmem:[%s1 + $0x198] sm:$0xff]
      %v438 = vld [vmem:[%s1 + $0x1a0] sm:$0xff]
      %v439 = vld [vmem:[%s1 + $0x1a8] sm:$0xff]
      %v440 = vld [vmem:[%s1 + $0x1b0] sm:$0xff]
      %v441 = vld [vmem:[%s1 + $0x1b8] sm:$0xff]
      %v442 = vld [vmem:[%s1 + $0x1c0] sm:$0xff]
      %v443 = vld [vmem:[%s1 + $0x1c8] sm:$0xff]
      %v444 = vld [vmem:[%s1 + $0x1d0] sm:$0xff]
      %v445 = vld [vmem:[%s1 + $0x1d8] sm:$0xff]
      %v446 = vld [vmem:[%s1 + $0x1e0] sm:$0xff]
      %v447 = vld [vmem:[%s1 + $0x1e8] sm:$0xff]
      %v448 = vld [vmem:[%s1 + $0x1f0] sm:$0xff]
      %v449 = vld [vmem:[%s1 + $0x1f8] sm:$0xff]
      %v450 = vld [vmem:[%s2] sm:$0x3]
      %v452 = vperm.slane %v450, 0
      %v453 = vperm.slane %v450, 1
      %456 = vmatpush.msra.mxu0 %v416
      %457 = vmatpush.msra.mxu0 %v414
      %458 = vmatpush.msra.mxu0 %v412
      %459 = vmatpush.msra.mxu0 %v410
      %460 = vmatpush.msra.mxu0 %v408
      %461 = vmatpush.msra.mxu0 %v406
      %462 = vmatpush.msra.mxu0 %v404
      %463 = vmatpush.msra.mxu0 %v402
      %464 = vmatpush.msra.mxu0 %v400
      %465 = vmatpush.msra.mxu0 %v398
      %466 = vmatpush.msra.mxu0 %v396
      %467 = vmatpush.msra.mxu0 %v394
      %468 = vmatpush.msra.mxu0 %v392
      %469 = vmatpush.msra.mxu0 %v390
      %470 = vmatpush.msra.mxu0 %v388
      %471 = vmatpush.msra.mxu0 %v386
      %472 = vmatmul.f32.gmra.mxu0 %v382
      %v473 = vpop.f32.mrf.mxu0
      %v474 = vadd.f32 %v452, %v473
      %475 = vmatmul.f32.gmra.mxu0 %v384
      %v476 = vpop.f32.mrf.mxu0
      %v477 = vadd.f32 %v452, %v476
      %478 = vdwg.mxu0
      %479 = vmatpush.msra.mxu0 %v448
      %480 = vmatpush.msra.mxu0 %v446
      %481 = vmatpush.msra.mxu0 %v444
      %482 = vmatpush.msra.mxu0 %v442
      %483 = vmatpush.msra.mxu0 %v440
      %484 = vmatpush.msra.mxu0 %v438
      %485 = vmatpush.msra.mxu0 %v436
      %486 = vmatpush.msra.mxu0 %v434
      %487 = vmatpush.msra.mxu0 %v432
      %488 = vmatpush.msra.mxu0 %v430
      %489 = vmatpush.msra.mxu0 %v428
      %490 = vmatpush.msra.mxu0 %v426
      %491 = vmatpush.msra.mxu0 %v424
      %492 = vmatpush.msra.mxu0 %v422
      %493 = vmatpush.msra.mxu0 %v420
      %494 = vmatpush.msra.mxu0 %v418
      %495 = vmatmul.f32.gmra.mxu0 %v383
      %v496 = vpop.f32.mrf.mxu0
      %v497 = vadd.f32 %v474, %v496
      %498 = vmatmul.f32.gmra.mxu0 %v385
      %v499 = vpop.f32.mrf.mxu0
      %v500 = vadd.f32 %v477, %v499
      %501 = vdwg.mxu0
      %502 = vmatpush.msra.mxu0 %v417
      %503 = vmatpush.msra.mxu0 %v415
      %504 = vmatpush.msra.mxu0 %v413
      %505 = vmatpush.msra.mxu0 %v411
      %506 = vmatpush.msra.mxu0 %v409
      %507 = vmatpush.msra.mxu0 %v407
      %508 = vmatpush.msra.mxu0 %v405
      %509 = vmatpush.msra.mxu0 %v403
      %510 = vmatpush.msra.mxu0 %v401
      %511 = vmatpush.msra.mxu0 %v399
      %512 = vmatpush.msra.mxu0 %v397
      %513 = vmatpush.msra.mxu0 %v395
      %514 = vmatpush.msra.mxu0 %v393
      %515 = vmatpush.msra.mxu0 %v391
      %516 = vmatpush.msra.mxu0 %v389
      %517 = vmatpush.msra.mxu0 %v387
      %518 = vmatmul.f32.gmra.mxu0 %v382
      %v519 = vpop.f32.mrf.mxu0
      %v520 = vadd.f32 %v453, %v519
      %521 = vmatmul.f32.gmra.mxu0 %v384
      %v522 = vpop.f32.mrf.mxu0
      %v523 = vadd.f32 %v453, %v522
      %524 = vdwg.mxu0
      %525 = vmatpush.msra.mxu0 %v449
      %526 = vmatpush.msra.mxu0 %v447
      %527 = vmatpush.msra.mxu0 %v445
      %528 = vmatpush.msra.mxu0 %v443
      %529 = vmatpush.msra.mxu0 %v441
      %530 = vmatpush.msra.mxu0 %v439
      %531 = vmatpush.msra.mxu0 %v437
      %532 = vmatpush.msra.mxu0 %v435
      %533 = vmatpush.msra.mxu0 %v433
      %534 = vmatpush.msra.mxu0 %v431
      %535 = vmatpush.msra.mxu0 %v429
      %536 = vmatpush.msra.mxu0 %v427
      %537 = vmatpush.msra.mxu0 %v425
      %538 = vmatpush.msra.mxu0 %v423
      %539 = vmatpush.msra.mxu0 %v421
      %540 = vmatpush.msra.mxu0 %v419
      %541 = vmatmul.f32.gmra.mxu0 %v383
      %v542 = vpop.f32.mrf.mxu0
      %v543 = vadd.f32 %v520, %v542
      %544 = vmatmul.f32.gmra.mxu0 %v385
      %v545 = vpop.f32.mrf.mxu0
      %v546 = vadd.f32 %v523, %v545
      %547 = vdwg.mxu0
      %v548 = vmax.f32 %v497, 0.0
      %v549 = vmax.f32 %v543, 0.0
      %v550 = vmax.f32 %v500, 0.0
      %v551 = vmax.f32 %v546, 0.0
      %v552 = vld [vmem:[%s3] sm:$0xff]
      %v553 = vld [vmem:[%s3 + $0x8] sm:$0xff]
      %v554 = vld [vmem:[%s3 + $0x10] sm:$0xff]
      %v555 = vld [vmem:[%s3 + $0x18] sm:$0xff]
      %v556 = vld [vmem:[%s3 + $0x20] sm:$0xff]
      %v557 = vld [vmem:[%s3 + $0x28] sm:$0xff]
      %v558 = vld [vmem:[%s3 + $0x30] sm:$0xff]
      %v559 = vld [vmem:[%s3 + $0x38] sm:$0xff]
      %v560 = vld [vmem:[%s3 + $0x40] sm:$0xff]
      %v561 = vld [vmem:[%s3 + $0x48] sm:$0xff]
      %v562 = vld [vmem:[%s3 + $0x50] sm:$0xff]
      %v563 = vld [vmem:[%s3 + $0x58] sm:$0xff]
      %v564 = vld [vmem:[%s3 + $0x60] sm:$0xff]
      %v565 = vld [vmem:[%s3 + $0x68] sm:$0xff]
      %v566 = vld [vmem:[%s3 + $0x70] sm:$0xff]
      %v567 = vld [vmem:[%s3 + $0x78] sm:$0xff]
      %v568 = vld [vmem:[%s3 + $0x80] sm:$0xff]
      %v569 = vld [vmem:[%s3 + $0x88] sm:$0xff]
      %v570 = vld [vmem:[%s3 + $0x90] sm:$0xff]
      %v571 = vld [vmem:[%s3 + $0x98] sm:$0xff]
      %v572 = vld [vmem:[%s3 + $0xa0] sm:$0xff]
      %v573 = vld [vmem:[%s3 + $0xa8] sm:$0xff]
      %v574 = vld [vmem:[%s3 + $0xb0] sm:$0xff]
      %v575 = vld [vmem:[%s3 + $0xb8] sm:$0xff]
      %v576 = vld [vmem:[%s3 + $0xc0] sm:$0xff]
      %v577 = vld [vmem:[%s3 + $0xc8] sm:$0xff]
      %v578 = vld [vmem:[%s3 + $0xd0] sm:$0xff]
      %v579 = vld [vmem:[%s3 + $0xd8] sm:$0xff]
      %v580 = vld [vmem:[%s3 + $0xe0] sm:$0xff]
      %v581 = vld [vmem:[%s3 + $0xe8] sm:$0xff]
      %v582 = vld [vmem:[%s3 + $0xf0] sm:$0xff]
      %v583 = vld [vmem:[%s3 + $0xf8] sm:$0xff]
      %v584 = vld [vmem:[%s4] sm:$0x1]
      %v586 = vperm.slane %v584, 0
      %588 = vmatpush.msra.mxu0 %v567
      %589 = vmatpush.msra.mxu0 %v566
      %590 = vmatpush.msra.mxu0 %v565
      %591 = vmatpush.msra.mxu0 %v564
      %592 = vmatpush.msra.mxu0 %v563
      %593 = vmatpush.msra.mxu0 %v562
      %594 = vmatpush.msra.mxu0 %v561
      %595 = vmatpush.msra.mxu0 %v560
      %596 = vmatpush.msra.mxu0 %v559
      %597 = vmatpush.msra.mxu0 %v558
      %598 = vmatpush.msra.mxu0 %v557
      %599 = vmatpush.msra.mxu0 %v556
      %600 = vmatpush.msra.mxu0 %v555
      %601 = vmatpush.msra.mxu0 %v554
      %602 = vmatpush.msra.mxu0 %v553
      %603 = vmatpush.msra.mxu0 %v552
      %604 = vmatmul.f32.gmra.mxu0 %v548
      %v605 = vpop.f32.mrf.mxu0
      %v606 = vadd.f32 %v586, %v605
      %607 = vmatmul.f32.gmra.mxu0 %v550
      %v608 = vpop.f32.mrf.mxu0
      %v609 = vadd.f32 %v586, %v608
      %610 = vdwg.mxu0
      %611 = vmatpush.msra.mxu0 %v583
      %612 = vmatpush.msra.mxu0 %v582
      %613 = vmatpush.msra.mxu0 %v581
      %614 = vmatpush.msra.mxu0 %v580
      %615 = vmatpush.msra.mxu0 %v579
      %616 = vmatpush.msra.mxu0 %v578
      %617 = vmatpush.msra.mxu0 %v577
      %618 = vmatpush.msra.mxu0 %v576
      %619 = vmatpush.msra.mxu0 %v575
      %620 = vmatpush.msra.mxu0 %v574
      %621 = vmatpush.msra.mxu0 %v573
      %622 = vmatpush.msra.mxu0 %v572
      %623 = vmatpush.msra.mxu0 %v571
      %624 = vmatpush.msra.mxu0 %v570
      %625 = vmatpush.msra.mxu0 %v569
      %626 = vmatpush.msra.mxu0 %v568
      %627 = vmatmul.f32.gmra.mxu0 %v549
      %v628 = vpop.f32.mrf.mxu0
      %v629 = vadd.f32 %v606, %v628
      %630 = vmatmul.f32.gmra.mxu0 %v551
      %v631 = vpop.f32.mrf.mxu0
      %v632 = vadd.f32 %v609, %v631
      %633 = vdwg.mxu0
      %634 = vst [vmem:[%s373] sm:$0xff] %v629
      %635 = vst [vmem:[%s373 + $0x8] sm:$0xff] %v632
      %v636 = vld [vmem:[%s5] sm:$0xff]
      %v637 = vld [vmem:[%s5 + $0x8] sm:$0xff]
      %v638 = vld [vmem:[%s5 + $0x10] sm:$0xff]
      %v639 = vld [vmem:[%s5 + $0x18] sm:$0xff]
      %v640 = vld [vmem:[%s5 + $0x20] sm:$0xff]
      %v641 = vld [vmem:[%s5 + $0x28] sm:$0xff]
      %v642 = vld [vmem:[%s5 + $0x30] sm:$0xff]
      %v643 = vld [vmem:[%s5 + $0x38] sm:$0xff]
      %v644 = vld [vmem:[%s5 + $0x40] sm:$0xff]
      %v645 = vld [vmem:[%s5 + $0x48] sm:$0xff]
      %v646 = vld [vmem:[%s5 + $0x50] sm:$0xff]
      %v647 = vld [vmem:[%s5 + $0x58] sm:$0xff]
      %v648 = vld [vmem:[%s5 + $0x60] sm:$0xff]
      %v649 = vld [vmem:[%s5 + $0x68] sm:$0xff]
      %v650 = vld [vmem:[%s5 + $0x70] sm:$0xff]
      %v651 = vld [vmem:[%s5 + $0x78] sm:$0xff]
      %v652 = vld [vmem:[%s5 + $0x80] sm:$0xff]
      %v653 = vld [vmem:[%s5 + $0x88] sm:$0xff]
      %v654 = vld [vmem:[%s5 + $0x90] sm:$0xff]
      %v655 = vld [vmem:[%s5 + $0x98] sm:$0xff]
      %v656 = vld [vmem:[%s5 + $0xa0] sm:$0xff]
      %v657 = vld [vmem:[%s5 + $0xa8] sm:$0xff]
      %v658 = vld [vmem:[%s5 + $0xb0] sm:$0xff]
      %v659 = vld [vmem:[%s5 + $0xb8] sm:$0xff]
      %v660 = vld [vmem:[%s5 + $0xc0] sm:$0xff]
      %v661 = vld [vmem:[%s5 + $0xc8] sm:$0xff]
      %v662 = vld [vmem:[%s5 + $0xd0] sm:$0xff]
      %v663 = vld [vmem:[%s5 + $0xd8] sm:$0xff]
      %v664 = vld [vmem:[%s5 + $0xe0] sm:$0xff]
      %v665 = vld [vmem:[%s5 + $0xe8] sm:$0xff]
      %v666 = vld [vmem:[%s5 + $0xf0] sm:$0xff]
      %v667 = vld [vmem:[%s5 + $0xf8] sm:$0xff]
      %v668 = vld [vmem:[%s6] sm:$0x3]
      %v670 = vperm.slane %v668, 0
      %v671 = vperm.slane %v668, 1
      %674 = vmatpush.msra.mxu0 %v666
      %675 = vmatpush.msra.mxu0 %v664
      %676 = vmatpush.msra.mxu0 %v662
      %677 = vmatpush.msra.mxu0 %v660
      %678 = vmatpush.msra.mxu0 %v658
      %679 = vmatpush.msra.mxu0 %v656
      %680 = vmatpush.msra.mxu0 %v654
      %681 = vmatpush.msra.mxu0 %v652
      %682 = vmatpush.msra.mxu0 %v650
      %683 = vmatpush.msra.mxu0 %v648
      %684 = vmatpush.msra.mxu0 %v646
      %685 = vmatpush.msra.mxu0 %v644
      %686 = vmatpush.msra.mxu0 %v642
      %687 = vmatpush.msra.mxu0 %v640
      %688 = vmatpush.msra.mxu0 %v638
      %689 = vmatpush.msra.mxu0 %v636
      %690 = vmatmul.f32.gmra.mxu0 %v629
      %v691 = vpop.f32.mrf.mxu0
      %v692 = vadd.f32 %v670, %v691
      %693 = vmatmul.f32.gmra.mxu0 %v632
      %v694 = vpop.f32.mrf.mxu0
      %v695 = vadd.f32 %v670, %v694
      %696 = vdwg.mxu0
      %697 = vmatpush.msra.mxu0 %v667
      %698 = vmatpush.msra.mxu0 %v665
      %699 = vmatpush.msra.mxu0 %v663
      %700 = vmatpush.msra.mxu0 %v661
      %701 = vmatpush.msra.mxu0 %v659
      %702 = vmatpush.msra.mxu0 %v657
      %703 = vmatpush.msra.mxu0 %v655
      %704 = vmatpush.msra.mxu0 %v653
      %705 = vmatpush.msra.mxu0 %v651
      %706 = vmatpush.msra.mxu0 %v649
      %707 = vmatpush.msra.mxu0 %v647
      %708 = vmatpush.msra.mxu0 %v645
      %709 = vmatpush.msra.mxu0 %v643
      %710 = vmatpush.msra.mxu0 %v641
      %711 = vmatpush.msra.mxu0 %v639
      %712 = vmatpush.msra.mxu0 %v637
      %713 = vmatmul.f32.gmra.mxu0 %v629
      %v714 = vpop.f32.mrf.mxu0
      %v715 = vadd.f32 %v671, %v714
      %716 = vmatmul.f32.gmra.mxu0 %v632
      %v717 = vpop.f32.mrf.mxu0
      %v718 = vadd.f32 %v671, %v717
      %719 = vdwg.mxu0
      %v720 = vmax.f32 %v692, 0.0
      %v721 = vmax.f32 %v715, 0.0
      %v722 = vmax.f32 %v695, 0.0
      %v723 = vmax.f32 %v718, 0.0
      %v724 = vld [vmem:[%s7] sm:$0xff]
      %v725 = vld [vmem:[%s7 + $0x8] sm:$0xff]
      %v726 = vld [vmem:[%s7 + $0x10] sm:$0xff]
      %v727 = vld [vmem:[%s7 + $0x18] sm:$0xff]
      %v728 = vld [vmem:[%s7 + $0x20] sm:$0xff]
      %v729 = vld [vmem:[%s7 + $0x28] sm:$0xff]
      %v730 = vld [vmem:[%s7 + $0x30] sm:$0xff]
      %v731 = vld [vmem:[%s7 + $0x38] sm:$0xff]
      %v732 = vld [vmem:[%s7 + $0x40] sm:$0xff]
      %v733 = vld [vmem:[%s7 + $0x48] sm:$0xff]
      %v734 = vld [vmem:[%s7 + $0x50] sm:$0xff]
      %v735 = vld [vmem:[%s7 + $0x58] sm:$0xff]
      %v736 = vld [vmem:[%s7 + $0x60] sm:$0xff]
      %v737 = vld [vmem:[%s7 + $0x68] sm:$0xff]
      %v738 = vld [vmem:[%s7 + $0x70] sm:$0xff]
      %v739 = vld [vmem:[%s7 + $0x78] sm:$0xff]
      %v740 = vld [vmem:[%s7 + $0x80] sm:$0xff]
      %v741 = vld [vmem:[%s7 + $0x88] sm:$0xff]
      %v742 = vld [vmem:[%s7 + $0x90] sm:$0xff]
      %v743 = vld [vmem:[%s7 + $0x98] sm:$0xff]
      %v744 = vld [vmem:[%s7 + $0xa0] sm:$0xff]
      %v745 = vld [vmem:[%s7 + $0xa8] sm:$0xff]
      %v746 = vld [vmem:[%s7 + $0xb0] sm:$0xff]
      %v747 = vld [vmem:[%s7 + $0xb8] sm:$0xff]
      %v748 = vld [vmem:[%s7 + $0xc0] sm:$0xff]
      %v749 = vld [vmem:[%s7 + $0xc8] sm:$0xff]
      %v750 = vld [vmem:[%s7 + $0xd0] sm:$0xff]
      %v751 = vld [vmem:[%s7 + $0xd8] sm:$0xff]
      %v752 = vld [vmem:[%s7 + $0xe0] sm:$0xff]
      %v753 = vld [vmem:[%s7 + $0xe8] sm:$0xff]
      %v754 = vld [vmem:[%s7 + $0xf0] sm:$0xff]
      %v755 = vld [vmem:[%s7 + $0xf8] sm:$0xff]
      %v756 = vld [vmem:[%s7 + $0x100] sm:$0xff]
      %v757 = vld [vmem:[%s7 + $0x108] sm:$0xff]
      %v758 = vld [vmem:[%s7 + $0x110] sm:$0xff]
      %v759 = vld [vmem:[%s7 + $0x118] sm:$0xff]
      %v760 = vld [vmem:[%s7 + $0x120] sm:$0xff]
      %v761 = vld [vmem:[%s7 + $0x128] sm:$0xff]
      %v762 = vld [vmem:[%s7 + $0x130] sm:$0xff]
      %v763 = vld [vmem:[%s7 + $0x138] sm:$0xff]
      %v764 = vld [vmem:[%s7 + $0x140] sm:$0xff]
      %v765 = vld [vmem:[%s7 + $0x148] sm:$0xff]
      %v766 = vld [vmem:[%s7 + $0x150] sm:$0xff]
      %v767 = vld [vmem:[%s7 + $0x158] sm:$0xff]
      %v768 = vld [vmem:[%s7 + $0x160] sm:$0xff]
      %v769 = vld [vmem:[%s7 + $0x168] sm:$0xff]
      %v770 = vld [vmem:[%s7 + $0x170] sm:$0xff]
      %v771 = vld [vmem:[%s7 + $0x178] sm:$0xff]
      %v772 = vld [vmem:[%s7 + $0x180] sm:$0xff]
      %v773 = vld [vmem:[%s7 + $0x188] sm:$0xff]
      %v774 = vld [vmem:[%s7 + $0x190] sm:$0xff]
      %v775 = vld [vmem:[%s7 + $0x198] sm:$0xff]
      %v776 = vld [vmem:[%s7 + $0x1a0] sm:$0xff]
      %v777 = vld [vmem:[%s7 + $0x1a8] sm:$0xff]
      %v778 = vld [vmem:[%s7 + $0x1b0] sm:$0xff]
      %v779 = vld [vmem:[%s7 + $0x1b8] sm:$0xff]
      %v780 = vld [vmem:[%s7 + $0x1c0] sm:$0xff]
      %v781 = vld [vmem:[%s7 + $0x1c8] sm:$0xff]
      %v782 = vld [vmem:[%s7 + $0x1d0] sm:$0xff]
      %v783 = vld [vmem:[%s7 + $0x1d8] sm:$0xff]
      %v784 = vld [vmem:[%s7 + $0x1e0] sm:$0xff]
      %v785 = vld [vmem:[%s7 + $0x1e8] sm:$0xff]
      %v786 = vld [vmem:[%s7 + $0x1f0] sm:$0xff]
      %v787 = vld [vmem:[%s7 + $0x1f8] sm:$0xff]
      %v788 = vld [vmem:[%s8] sm:$0x3]
      %v790 = vperm.slane %v788, 0
      %v791 = vperm.slane %v788, 1
      %794 = vmatpush.msra.mxu0 %v754
      %795 = vmatpush.msra.mxu0 %v752
      %796 = vmatpush.msra.mxu0 %v750
      %797 = vmatpush.msra.mxu0 %v748
      %798 = vmatpush.msra.mxu0 %v746
      %799 = vmatpush.msra.mxu0 %v744
      %800 = vmatpush.msra.mxu0 %v742
      %801 = vmatpush.msra.mxu0 %v740
      %802 = vmatpush.msra.mxu0 %v738
      %803 = vmatpush.msra.mxu0 %v736
      %804 = vmatpush.msra.mxu0 %v734
      %805 = vmatpush.msra.mxu0 %v732
      %806 = vmatpush.msra.mxu0 %v730
      %807 = vmatpush.msra.mxu0 %v728
      %808 = vmatpush.msra.mxu0 %v726
      %809 = vmatpush.msra.mxu0 %v724
      %810 = vmatmul.f32.gmra.mxu0 %v720
      %v811 = vpop.f32.mrf.mxu0
      %v812 = vadd.f32 %v790, %v811
      %813 = vmatmul.f32.gmra.mxu0 %v722
      %v814 = vpop.f32.mrf.mxu0
      %v815 = vadd.f32 %v790, %v814
      %816 = vdwg.mxu0
      %817 = vmatpush.msra.mxu0 %v786
      %818 = vmatpush.msra.mxu0 %v784
      %819 = vmatpush.msra.mxu0 %v782
      %820 = vmatpush.msra.mxu0 %v780
      %821 = vmatpush.msra.mxu0 %v778
      %822 = vmatpush.msra.mxu0 %v776
      %823 = vmatpush.msra.mxu0 %v774
      %824 = vmatpush.msra.mxu0 %v772
      %825 = vmatpush.msra.mxu0 %v770
      %826 = vmatpush.msra.mxu0 %v768
      %827 = vmatpush.msra.mxu0 %v766
      %828 = vmatpush.msra.mxu0 %v764
      %829 = vmatpush.msra.mxu0 %v762
      %830 = vmatpush.msra.mxu0 %v760
      %831 = vmatpush.msra.mxu0 %v758
      %832 = vmatpush.msra.mxu0 %v756
      %833 = vmatmul.f32.gmra.mxu0 %v721
      %v834 = vpop.f32.mrf.mxu0
      %v835 = vadd.f32 %v812, %v834
      %836 = vmatmul.f32.gmra.mxu0 %v723
      %v837 = vpop.f32.mrf.mxu0
      %v838 = vadd.f32 %v815, %v837
      %839 = vdwg.mxu0
      %840 = vmatpush.msra.mxu0 %v755
      %841 = vmatpush.msra.mxu0 %v753
      %842 = vmatpush.msra.mxu0 %v751
      %843 = vmatpush.msra.mxu0 %v749
      %844 = vmatpush.msra.mxu0 %v747
      %845 = vmatpush.msra.mxu0 %v745
      %846 = vmatpush.msra.mxu0 %v743
      %847 = vmatpush.msra.mxu0 %v741
      %848 = vmatpush.msra.mxu0 %v739
      %849 = vmatpush.msra.mxu0 %v737
      %850 = vmatpush.msra.mxu0 %v735
      %851 = vmatpush.msra.mxu0 %v733
      %852 = vmatpush.msra.mxu0 %v731
      %853 = vmatpush.msra.mxu0 %v729
      %854 = vmatpush.msra.mxu0 %v727
      %855 = vmatpush.msra.mxu0 %v725
      %856 = vmatmul.f32.gmra.mxu0 %v720
      %v857 = vpop.f32.mrf.mxu0
      %v858 = vadd.f32 %v791, %v857
      %859 = vmatmul.f32.gmra.mxu0 %v722
      %v860 = vpop.f32.mrf.mxu0
      %v861 = vadd.f32 %v791, %v860
      %862 = vdwg.mxu0
      %863 = vmatpush.msra.mxu0 %v787
      %864 = vmatpush.msra.mxu0 %v785
      %865 = vmatpush.msra.mxu0 %v783
      %866 = vmatpush.msra.mxu0 %v781
      %867 = vmatpush.msra.mxu0 %v779
      %868 = vmatpush.msra.mxu0 %v777
      %869 = vmatpush.msra.mxu0 %v775
      %870 = vmatpush.msra.mxu0 %v773
      %871 = vmatpush.msra.mxu0 %v771
      %872 = vmatpush.msra.mxu0 %v769
      %873 = vmatpush.msra.mxu0 %v767
      %874 = vmatpush.msra.mxu0 %v765
      %875 = vmatpush.msra.mxu0 %v763
      %876 = vmatpush.msra.mxu0 %v761
      %877 = vmatpush.msra.mxu0 %v759
      %878 = vmatpush.msra.mxu0 %v757
      %879 = vmatmul.f32.gmra.mxu0 %v721
      %v880 = vpop.f32.mrf.mxu0
      %v881 = vadd.f32 %v858, %v880
      %882 = vmatmul.f32.gmra.mxu0 %v723
      %v883 = vpop.f32.mrf.mxu0
      %v884 = vadd.f32 %v861, %v883
      %885 = vdwg.mxu0
      %886 = vst [vmem:[%s380] sm:$0xff] %v835
      %887 = vst [vmem:[%s380 + $0x8] sm:$0xff] %v881
      %888 = vst [vmem:[%s380 + $0x10] sm:$0xff] %v838
      %889 = vst [vmem:[%s380 + $0x18] sm:$0xff] %v884
      %s890 = smul.u32 2, %s22
      %p891 = scmp.lt.s32.totalorder %s890, 3
      %s892 = scalar_select %p891, %s890, 3
      %s893 = smul.addr %s892, 8
      %s894 = scalar_lea.vmem %s9, %s893
      %s895 = smul.u32 2, %s22
      %p896 = scmp.lt.s32.totalorder %s895, 3
      %s897 = scalar_select %p896, %s895, 3
      %s898 = smul.addr %s897, 2
      %s899 = smul.addr %s898, 8
      %s900 = scalar_lea.vmem %s10, %s899
      // Predicated region
      $region57: #{fair_ac_forward.1} parent=55 // pred_check
        %p901 = pneg %p234
      $region58: #{fair_ac_forward.1} parent=55 // pred_check_branch
        %903 = sbr.rel (%p901) target = $region60
      $region59: #{fair_ac_forward.1} parent=55 // pred_region
        %s904 = smul.u32 2, %s22
      $region60: #{fair_ac_forward.1} parent=55 // pred_fallthru
        _
      // Predicated region
      $region61: #{fair_ac_forward.1} parent=55 // pred_check
        %p905 = pneg %p260
      $region62: #{fair_ac_forward.1} parent=55 // pred_check_branch
        %907 = sbr.rel (%p905) target = $region64
      $region63: #{fair_ac_forward.1} parent=55 // pred_region
        %s908 = smul.u32 2, %s22
      $region64: #{fair_ac_forward.1} parent=55 // pred_fallthru
        _
    $region56: #{fair_ac_forward.1} parent=5 // pred_fallthru
      _
    %p909 = scmp.le.s32.totalorder 2, %s17
    // Predicated region
    $region65: #{fair_ac_forward.1} parent=5 // pred_check
      %p910 = pneg %p909
    $region66: #{fair_ac_forward.1} parent=5 // pred_check_branch
      %912 = sbr.rel (%p910) target = $region68
    $region67: #{fair_ac_forward.1} parent=5 // pred_region
      %s913 = ssub.s32 %s17, 2
      // Predicated region
      $region69: #{fair_ac_forward.1} parent=67 // pred_check
        %p914 = pneg %p240
      $region70: #{fair_ac_forward.1} parent=67 // pred_check_branch
        %916 = sbr.rel (%p914) target = $region72
      $region71: #{fair_ac_forward.1} parent=67 // pred_region
        %s917 = smul.u32 2, %s23
        %p918 = scmp.lt.s32.totalorder %s917, 3
        %s919 = scalar_select %p918, %s917, 3
        %s920 = smul.addr %s919, 8
        %s921 = scalar_lea.vmem %s9, %s920
      $region72: #{fair_ac_forward.1} parent=67 // pred_fallthru
        _
      // Predicated region
      $region73: #{fair_ac_forward.1} parent=67 // pred_check
        %p922 = pneg %p266
      $region74: #{fair_ac_forward.1} parent=67 // pred_check_branch
        %924 = sbr.rel (%p922) target = $region76
      $region75: #{fair_ac_forward.1} parent=67 // pred_region
        %s925 = smul.u32 2, %s23
        %p926 = scmp.lt.s32.totalorder %s925, 3
        %s927 = scalar_select %p926, %s925, 3
        %s928 = smul.addr %s927, 2
        %s929 = smul.addr %s928, 8
        %s930 = scalar_lea.vmem %s10, %s929
      $region76: #{fair_ac_forward.1} parent=67 // pred_fallthru
        _
    $region68: #{fair_ac_forward.1} parent=5 // pred_fallthru
      _
  $region6: #{fair_ac_forward.1} parent=0 // loop_footer
    %s21 = sadd.s32 1, %s17
  $region7: #{fair_ac_forward.1} parent=0 // loop_footer_branch
    %16 = sbr.rel target = $region3
  $region8: #{fair_ac_forward.1} parent=0 // loop_exit
    _

</llo_original>
